<compile_context>
chip_gen: v7x
topology: tpu7x:2x2x1
jax: 0.10.0
libtpu: 0.0.40
codegen_flags: <defaults>
</compile_context>

<pallas_src>
import functools

import jax
import jax.numpy as jnp
from jax import lax
from jax.experimental import pallas as pl
from jax.experimental.pallas import tpu as pltpu


_MXU_DEPTH = 256            # v6e / v7x MXU contraction depth
_SUBLANE_ALIGN = 16         # tile row alignment (safe for f32 and bf16 x)
_DEFAULT_TILE_ROWS = 8192   # folded rows per grid step (~8 MiB f32 x tile)
_MIN_PALLAS_ROWS = 65536    # below ~1 tile of original rows XLA's GEMV wins


def _round_up(a, b):
    return (a + b - 1) // b * b


def _pick_fold(ndim):
    # Prefer K = 256 (v6e/v7x MXU depth); fall back to 128; else no fold.
    for k_target in (_MXU_DEPTH, 128):
        if ndim <= k_target and k_target % ndim == 0:
            return k_target // ndim
    return 1  # lane-sparse fallback: correct, slower


def _linear_kernel(x_ref, w_ref, b_ref, o_ref, *, mxu_bf16):
    # x_ref: (tile, K) VMEM tile (double-buffered), w_ref: (K, fold) resident
    # VMEM weight, b_ref: (1,) SMEM scalar.  MXU matmul + VPU bias broadcast.
    x = x_ref[...]
    w = w_ref[...]
    if mxu_bf16:
        x = x.astype(jnp.bfloat16)
        w = w.astype(jnp.bfloat16)
    else:
        x = x.astype(jnp.float32)
        w = w.astype(jnp.float32)
    acc = jnp.dot(x, w, preferred_element_type=jnp.float32)
    o_ref[...] = acc + b_ref[0]


def linear_model_forward(x, weight, bias, *, tile_rows=_DEFAULT_TILE_ROWS,
                         mxu_bf16=True, force_pallas=False):
    """Pallas equivalent of LinearModel.forward: (x @ weight + bias, weight, bias)."""
    n, ndim = x.shape
    assert weight.shape == (ndim, 1)
    assert bias.shape == (1,)

    if x.dtype not in (jnp.float32, jnp.bfloat16):
        x = x.astype(jnp.float32)
    weight = weight.astype(jnp.float32)
    bias = bias.astype(jnp.float32)

    def xla_gemv(xs):
        return (jnp.dot(xs.astype(jnp.float32), weight,
                        precision=lax.Precision.HIGHEST) + bias)

    fold = _pick_fold(ndim)
    n_groups = n // fold                     # fully-folded rows

    # Tiny inputs: fixed launch / per-step overhead dwarfs the work.
    if (not force_pallas and n < _MIN_PALLAS_ROWS) or n_groups < _SUBLANE_ALIGN:
        return xla_gemv(x), weight, bias

    k_dim = ndim * fold
    if fold > 1:
        # Block-diagonal weight: w_f[j*ndim + d, j] = weight[d, 0]
        w_f = jnp.kron(jnp.eye(fold, dtype=jnp.float32), weight)   # (k_dim, fold)
    else:
        w_f = weight                                               # (ndim, 1)

    n_main = n_groups * fold
    # Leading-row slice + row-major reshape: no data movement (unlike jnp.pad).
    x_f = x[:n_main].reshape(n_groups, k_dim)

    # Tile selection: multiple of the sublane alignment, big enough to amortize
    # per-step overhead, small enough to leave >=2 grid steps for v7x megacore.
    tile_rows = max(_SUBLANE_ALIGN, _round_up(int(tile_rows), _SUBLANE_ALIGN))
    tile = min(tile_rows, _round_up(n_groups, _SUBLANE_ALIGN))
    if pl.cdiv(n_groups, tile) < 2 and n_groups > _SUBLANE_ALIGN:
        tile = _round_up(pl.cdiv(n_groups, 2), _SUBLANE_ALIGN)
    num_tiles = pl.cdiv(n_groups, tile)      # last block may be partial (masked)

    kernel = functools.partial(_linear_kernel, mxu_bf16=mxu_bf16)

    out_f = pl.pallas_call(
        kernel,
        out_shape=jax.ShapeDtypeStruct((n_groups, fold), jnp.float32),
        grid_spec=pltpu.PrefetchScalarGridSpec(
            num_scalar_prefetch=0,
            grid=(num_tiles,),
            in_specs=[
                pl.BlockSpec((tile, k_dim), lambda i: (i, 0)),        # x tile
                pl.BlockSpec((k_dim, fold), lambda i: (0, 0)),        # weight (resident)
                pl.BlockSpec(memory_space=pltpu.MemorySpace.SMEM),    # bias scalar
            ],
            out_specs=pl.BlockSpec((tile, fold), lambda i: (i, 0)),
        ),
        compiler_params=pltpu.CompilerParams(
            dimension_semantics=("parallel",),         # megacore sharding on v7x
            vmem_limit_bytes=32 * 1024 * 1024,         # safe on v5e/v6e/v7x
        ),
        cost_estimate=pl.CostEstimate(
            flops=2 * n_main * ndim,
            bytes_accessed=int(x_f.dtype.itemsize) * n_main * ndim
                           + 4 * (k_dim * fold + n_main),
            transcendentals=0,
        ),
    )(x_f, w_f, bias)

    out_main = out_f.reshape(n_main, 1)      # free row-major reshape
    if n_main == n:
        out = out_main
    else:
        out = jnp.concatenate([out_main, xla_gemv(x[n_main:])], axis=0)
    return out, weight, bias


if __name__ == "__main__":
    key = jax.random.PRNGKey(0)
    kx, kw, kb, kx2 = jax.random.split(key, 4)

    ndim = 32
    weight = jax.random.normal(kw, (ndim, 1), dtype=jnp.float32)
    bias = jax.random.normal(kb, (1,), dtype=jnp.float32)

    ok = True

    # (a) small batch: single full block, exact-f32 MXU path.
    x_small = jax.random.normal(kx, (128, ndim), dtype=jnp.float32)
    ref_small = jnp.dot(x_small, weight, precision=lax.Precision.HIGHEST) + bias
    out_s, w_out, b_out = linear_model_forward(
        x_small, weight, bias, mxu_bf16=False, force_pallas=True)
    jax.block_until_ready(out_s)
    ok &= bool(jnp.allclose(out_s, ref_small, atol=1e-3, rtol=1e-4))
    ok &= bool(jnp.array_equal(w_out, weight)) and bool(jnp.array_equal(b_out, bias))

    # (b) ragged batch: multiple grid steps, masked partial last block,
    #     sub-fold XLA tail; f32 MXU operands (tight tolerance).
    x_big = jax.random.normal(kx2, (4003, ndim), dtype=jnp.float32)
    ref_big = jnp.dot(x_big, weight, precision=lax.Precision.HIGHEST) + bias
    out_b, _, _ = linear_model_forward(
        x_big, weight, bias, tile_rows=192, mxu_bf16=False, force_pallas=True)
    jax.block_until_ready(out_b)
    ok &= bool(jnp.allclose(out_b, ref_big, atol=1e-3, rtol=1e-4))

    # (c) default fast path: bf16 MXU operands, f32 accumulate (framework-
    #     default TPU matmul precision) -> looser tolerance.
    out_fast, _, _ = linear_model_forward(x_big, weight, bias, force_pallas=True)
    jax.block_until_ready(out_fast)
    ok &= bool(jnp.allclose(out_fast, ref_big, atol=2.5e-1, rtol=5e-2))

    assert ok, "mismatch vs reference"
    print("KERNEL_OK")
</pallas_src>

<mosaic_0001>
module attributes {stable_mosaic.version = 11 : i64} {
  func.func @_linear_kernel(%arg0: i32, %arg1: memref<16x256xf32, #tpu.memory_space<vmem>>, %arg2: memref<256x8xf32, #tpu.memory_space<vmem>>, %arg3: memref<1xf32, #tpu.memory_space<smem>>, %arg4: memref<16x8xf32, #tpu.memory_space<vmem>>) attributes {dimension_semantics = [#tpu.dimension_semantics<parallel>], iteration_bounds = array<i64: 1>, scalar_prefetch = 0 : i64, scratch_operands = 0 : i64, tpu.core_type = #tpu.core_type<tc>, window_params = [{transform_indices = @transform_0, window_bounds = array<i64: 16, 256>}, {pipeline_mode = #tpu.pipeline_mode<synchronous>, transform_indices = @transform_1, window_bounds = array<i64: 256, 8>}, {transform_indices = @transform_2, window_bounds = array<i64: 1>}, {transform_indices = @transform_3, window_bounds = array<i64: 16, 8>}]} {
    %c0 = arith.constant 0 : index
    %c0_0 = arith.constant 0 : index
    %0 = vector.load %arg1[%c0, %c0_0] : memref<16x256xf32, #tpu.memory_space<vmem>>, vector<16x256xf32>
    %c0_1 = arith.constant 0 : index
    %c0_2 = arith.constant 0 : index
    %1 = vector.load %arg2[%c0_1, %c0_2] : memref<256x8xf32, #tpu.memory_space<vmem>>, vector<256x8xf32>
    %cst = arith.constant dense<0.000000e+00> : vector<16x8xf32>
    %2 = tpu.matmul %0, %1, %cst {dimension_numbers = #tpu.dot_dimension_numbers<[1], [0], [0], [1], [0, 0, 1, 1], [], []>} : vector<16x256xf32>, vector<256x8xf32>, vector<16x8xf32> -> vector<16x8xf32>
    %c0_3 = arith.constant 0 : index
    %3 = memref.load %arg3[%c0_3] : memref<1xf32, #tpu.memory_space<smem>>
    %4 = vector.broadcast %3 : f32 to vector<16x8xf32>
    %5 = arith.addf %2, %4 : vector<16x8xf32>
    %c0_4 = arith.constant 0 : index
    %c0_5 = arith.constant 0 : index
    %6 = vector.load %arg4[%c0_4, %c0_5] : memref<16x8xf32, #tpu.memory_space<vmem>>, vector<16x8xf32>
    tpu.vector_store %arg4[%c0_4, %c0_5], %5 {strides = array<i32>} : memref<16x8xf32, #tpu.memory_space<vmem>>, vector<16x8xf32>,
    return
  }
  func.func @transform_0(%arg0: i32) -> (i32, i32) {
    %c0_i32 = arith.constant 0 : i32
    %c0_i32_0 = arith.constant 0 : i32
    return %arg0, %c0_i32 : i32, i32
  }
  func.func @transform_1(%arg0: i32) -> (i32, i32) {
    %c0_i32 = arith.constant 0 : i32
    %c0_i32_0 = arith.constant 0 : i32
    %c0_i32_1 = arith.constant 0 : i32
    return %c0_i32, %c0_i32_0 : i32, i32
  }
  func.func @transform_2(%arg0: i32) -> i32 {
    %c0_i32 = arith.constant 0 : i32
    %c0_i32_0 = arith.constant 0 : i32
    return %c0_i32 : i32
  }
  func.func @transform_3(%arg0: i32) -> (i32, i32) {
    %c0_i32 = arith.constant 0 : i32
    %c0_i32_0 = arith.constant 0 : i32
    return %arg0, %c0_i32 : i32, i32
  }
}

</mosaic_0001>

<llo_original>
// kernel: tpu_custom_call.1
$region0: #{tpu_custom_call.1}
  #allocation0 [shape = 'u32[]', space=smem, size = 0x4, offset = 0x4, fixed_abs, tag = 'smem constant byte address 0x4 - core index']
  #allocation1 [shape = 'u32[144,128]{1,0:T(1,128)}', space=vmem, size = 0x12000, scoped, tag = 'internal scratch']
  #allocation2 [shape = 'f32[1]{0:T(128)S(6)}', space=smem, size = 0x200, scoped, tag = 'scoped memory for tpu_custom_call.1']
  %s0 = inlined_call_operand.vmem [shape: f32[16,256], index: 0, kind: input, shape index: {}]
  %s1 = inlined_call_operand.vmem [shape: f32[256,8], index: 1, kind: input, shape index: {}]
  %s2 = inlined_call_operand.<no memory space> [shape: f32[1], index: 2, kind: input, shape index: {}]
  %s3 = inlined_call_operand.vmem [shape: f32[16,8], index: 3, kind: output, shape index: {}]
  %s4 = sld [smem:[#allocation0]]
  $region22: #{tpu_custom_call.1} parent=0
    _
  %s6 = ssub.s32 1, %s4
  %s7 = scalar_select 0, %s6, %s4
  %8 = sst [smem:[#allocation2]] %s2
  // Predicated region
  $region2: #{tpu_custom_call.1} parent=0 // pred_check
    _
  $region3: #{tpu_custom_call.1} parent=0 // pred_check_branch
    %10 = sbr.rel (0) target = $region5
  $region4: #{tpu_custom_call.1} parent=0 // pred_region
    _
  $region5: #{tpu_custom_call.1} parent=0 // pred_fallthru
    _
  // Predicated region
  $region6: #{tpu_custom_call.1} parent=0 // pred_check
    _
  $region7: #{tpu_custom_call.1} parent=0 // pred_check_branch
    %12 = sbr.rel (0) target = $region9
  $region8: #{tpu_custom_call.1} parent=0 // pred_region
    _
  $region9: #{tpu_custom_call.1} parent=0 // pred_fallthru
    _
  // Predicated region
  $region10: #{tpu_custom_call.1} parent=0 // pred_check
    _
  $region11: #{tpu_custom_call.1} parent=0 // pred_check_branch
    %14 = sbr.rel (0) target = $region13
  $region12: #{tpu_custom_call.1} parent=0 // pred_region
    _
  $region13: #{tpu_custom_call.1} parent=0 // pred_fallthru
    _
  %v15 = vld [vmem:[%s0] sm:$0xff]
  %v16 = vld [vmem:[%s0 + $0x8] sm:$0xff]
  %v17 = vld [vmem:[%s0 + $0x10] sm:$0xff]
  %v18 = vld [vmem:[%s0 + $0x18] sm:$0xff]
  %v19 = vld [vmem:[%s1] sm:$0xff]
  %v20 = vld [vmem:[%s1 + $0x8] sm:$0xff]
  %v21 = vld [vmem:[%s1 + $0x10] sm:$0xff]
  %v22 = vld [vmem:[%s1 + $0x18] sm:$0xff]
  %v23 = vld [vmem:[%s1 + $0x20] sm:$0xff]
  %v24 = vld [vmem:[%s1 + $0x28] sm:$0xff]
  %v25 = vld [vmem:[%s1 + $0x30] sm:$0xff]
  %v26 = vld [vmem:[%s1 + $0x38] sm:$0xff]
  %v27 = vld [vmem:[%s1 + $0x40] sm:$0xff]
  %v28 = vld [vmem:[%s1 + $0x48] sm:$0xff]
  %v29 = vld [vmem:[%s1 + $0x50] sm:$0xff]
  %v30 = vld [vmem:[%s1 + $0x58] sm:$0xff]
  %v31 = vld [vmem:[%s1 + $0x60] sm:$0xff]
  %v32 = vld [vmem:[%s1 + $0x68] sm:$0xff]
  %v33 = vld [vmem:[%s1 + $0x70] sm:$0xff]
  %v34 = vld [vmem:[%s1 + $0x78] sm:$0xff]
  %v35 = vld [vmem:[%s1 + $0x80] sm:$0xff]
  %v36 = vld [vmem:[%s1 + $0x88] sm:$0xff]
  %v37 = vld [vmem:[%s1 + $0x90] sm:$0xff]
  %v38 = vld [vmem:[%s1 + $0x98] sm:$0xff]
  %v39 = vld [vmem:[%s1 + $0xa0] sm:$0xff]
  %v40 = vld [vmem:[%s1 + $0xa8] sm:$0xff]
  %v41 = vld [vmem:[%s1 + $0xb0] sm:$0xff]
  %v42 = vld [vmem:[%s1 + $0xb8] sm:$0xff]
  %v43 = vld [vmem:[%s1 + $0xc0] sm:$0xff]
  %v44 = vld [vmem:[%s1 + $0xc8] sm:$0xff]
  %v45 = vld [vmem:[%s1 + $0xd0] sm:$0xff]
  %v46 = vld [vmem:[%s1 + $0xd8] sm:$0xff]
  %v47 = vld [vmem:[%s1 + $0xe0] sm:$0xff]
  %v48 = vld [vmem:[%s1 + $0xe8] sm:$0xff]
  %v49 = vld [vmem:[%s1 + $0xf0] sm:$0xff]
  %v50 = vld [vmem:[%s1 + $0xf8] sm:$0xff]
  %s51 = sld [smem:[#allocation2]]
  %v52 = vstv %s51
  %53 = vmatprep.subr.mxu0 0.0
  %54 = vmatpush1.msra.mxu0 %v19
  %55 = vmatprep.subr.mxu0 0.0
  %56 = vmatpush1.msra.mxu0 %v20
  %57 = vmatprep.subr.mxu0 0.0
  %58 = vmatpush1.msra.mxu0 %v21
  %59 = vmatprep.subr.mxu0 0.0
  %60 = vmatpush1.msra.mxu0 %v22
  %61 = vmatprep.subr.mxu0 0.0
  %62 = vmatpush1.msra.mxu0 %v23
  %63 = vmatprep.subr.mxu0 0.0
  %64 = vmatpush1.msra.mxu0 %v24
  %65 = vmatprep.subr.mxu0 0.0
  %66 = vmatpush1.msra.mxu0 %v25
  %67 = vmatprep.subr.mxu0 0.0
  %68 = vmatpush1.msra.mxu0 %v26
  %69 = vmatprep.subr.mxu0 0.0
  %70 = vmatpush1.msra.mxu0 %v27
  %71 = vmatprep.subr.mxu0 0.0
  %72 = vmatpush1.msra.mxu0 %v28
  %73 = vmatprep.subr.mxu0 0.0
  %74 = vmatpush1.msra.mxu0 %v29
  %75 = vmatprep.subr.mxu0 0.0
  %76 = vmatpush1.msra.mxu0 %v30
  %77 = vmatprep.subr.mxu0 0.0
  %78 = vmatpush1.msra.mxu0 %v31
  %79 = vmatprep.subr.mxu0 0.0
  %80 = vmatpush1.msra.mxu0 %v32
  %81 = vmatprep.subr.mxu0 0.0
  %82 = vmatpush1.msra.mxu0 %v33
  %83 = vmatprep.subr.mxu0 0.0
  %84 = vmatpush1.msra.mxu0 %v34
  %85 = vmatprep.subr.mxu0 0.0
  %86 = vmatpush1.msra.mxu0 %v35
  %87 = vmatprep.subr.mxu0 0.0
  %88 = vmatpush1.msra.mxu0 %v36
  %89 = vmatprep.subr.mxu0 0.0
  %90 = vmatpush1.msra.mxu0 %v37
  %91 = vmatprep.subr.mxu0 0.0
  %92 = vmatpush1.msra.mxu0 %v38
  %93 = vmatprep.subr.mxu0 0.0
  %94 = vmatpush1.msra.mxu0 %v39
  %95 = vmatprep.subr.mxu0 0.0
  %96 = vmatpush1.msra.mxu0 %v40
  %97 = vmatprep.subr.mxu0 0.0
  %98 = vmatpush1.msra.mxu0 %v41
  %99 = vmatprep.subr.mxu0 0.0
  %100 = vmatpush1.msra.mxu0 %v42
  %101 = vmatprep.subr.mxu0 0.0
  %102 = vmatpush1.msra.mxu0 %v43
  %103 = vmatprep.subr.mxu0 0.0
  %104 = vmatpush1.msra.mxu0 %v44
  %105 = vmatprep.subr.mxu0 0.0
  %106 = vmatpush1.msra.mxu0 %v45
  %107 = vmatprep.subr.mxu0 0.0
  %108 = vmatpush1.msra.mxu0 %v46
  %109 = vmatprep.subr.mxu0 0.0
  %110 = vmatpush1.msra.mxu0 %v47
  %111 = vmatprep.subr.mxu0 0.0
  %112 = vmatpush1.msra.mxu0 %v48
  %113 = vmatprep.subr.mxu0 0.0
  %114 = vmatpush1.msra.mxu0 %v49
  %115 = vmatprep.subr.mxu0 0.0
  %116 = vmatpush1.msra.mxu0 %v50
  %117 = vmatprep.mubr.f32.mxu0 %v16
  %118 = vmatmul.mubr.f32.gmra.mrb[0].mxu0 %v15
  %v119 = vpop.f32.mrb[0].mxu0
  %v120 = vadd.f32 %v52, %v119
  %v121 = vpop.f32.mrb[0].mxu0
  %122 = vmatprep.mubr.f32.mxu0 %v18
  %123 = vmatmul.mubr.f32.gmra.mrb[0].mxu0 %v17
  %v124 = vpop.f32.mrb[0].mxu0
  %v125 = vadd.f32 %v52, %v124
  %v126 = vpop.f32.mrb[0].mxu0
  %127 = vdwg.mxu0
  %vm128 = vcmask 64512
  %129 = vst.msk [vmem:[%s3] sm:$0xff] %vm128, %v120
  %130 = vst.msk [vmem:[%s3 + $0x8] sm:$0xff] %vm128, %v125
  // Predicated region
  $region14: #{tpu_custom_call.1} parent=0 // pred_check
    _
  $region15: #{tpu_custom_call.1} parent=0 // pred_check_branch
    %132 = sbr.rel (0) target = $region17
  $region16: #{tpu_custom_call.1} parent=0 // pred_region
    _
  $region17: #{tpu_custom_call.1} parent=0 // pred_fallthru
    _
  // Predicated region
  $region18: #{tpu_custom_call.1} parent=0 // pred_check
    _
  $region19: #{tpu_custom_call.1} parent=0 // pred_check_branch
    %134 = sbr.rel (0) target = $region21
  $region20: #{tpu_custom_call.1} parent=0 // pred_region
    _
  $region21: #{tpu_custom_call.1} parent=0 // pred_fallthru
    _

</llo_original>
